<compile_context>
chip_gen: v7x
topology: tpu7x:2x2x1
jax: 0.10.0
libtpu: 0.0.40
codegen_flags: <defaults>
</compile_context>

<pallas_src>
import functools
import math

import jax
import jax.numpy as jnp
from jax.experimental import pallas as pl
from jax.experimental.pallas import tpu as pltpu


def _mwp_kernel(x_ref, wd_ref, bd_ref, gamma_ref, beta_ref, wv_ref, bias_ref,
                o_ref, h_ref, *, eps):
    """One (row_tile x vocab_tile) output block.

    x_ref:     (TM, H)   input rows
    wd_ref:    (H, H)    dense weight, (in, out) layout (= PyTorch weight.T)
    bd_ref:    (1, H)    dense bias
    gamma_ref: (1, H)    LayerNorm scale
    beta_ref:  (1, H)    LayerNorm shift
    wv_ref:    (H, TV)   decoder weight slab, (in, out) layout
    bias_ref:  (1, TV)   decoder bias slab
    o_ref:     (TM, TV)  output logits block
    h_ref:     (TM, H)   f32 VMEM scratch = LayerNorm(dense(x)) for this row tile
    """

    # Dense + LayerNorm only once per row tile (vocab axis is the inner loop).
    @pl.when(pl.program_id(1) == 0)
    def _():
        x = x_ref[...].astype(jnp.float32)
        h = jnp.dot(x, wd_ref[...].astype(jnp.float32),
                    preferred_element_type=jnp.float32)
        h = h + bd_ref[...].astype(jnp.float32)
        # BertLayerNorm: biased variance, matches the PyTorch module exactly.
        u = jnp.mean(h, axis=-1, keepdims=True)
        d = h - u
        s = jnp.mean(d * d, axis=-1, keepdims=True)
        hn = d * jax.lax.rsqrt(s + eps)   # eps keeps padded rows finite too
        h_ref[...] = (gamma_ref[...].astype(jnp.float32) * hn
                      + beta_ref[...].astype(jnp.float32))

    # Decoder matmul + bias for this vocab slab (lane-dense output stores).
    logits = jnp.dot(h_ref[...], wv_ref[...].astype(jnp.float32),
                     preferred_element_type=jnp.float32)
    o_ref[...] = (logits + bias_ref[...].astype(jnp.float32)).astype(o_ref.dtype)


def _row_tiling(R, target):
    """Pick a row tile: full extent, or a large multiple-of-8 divisor of R.

    Returns (tile, padded_R).  Padding is a rare fallback (only when R > target
    and R has no multiple-of-8 divisor in [128, target]).
    """
    if R <= target:
        return R, R
    t = target
    while t >= 128:
        if R % t == 0:
            return t, R
        t -= 8
    padded = ((R + target - 1) // target) * target
    return target, padded


def _col_tiling(V, target):
    """Pick a vocab (lane) tile: 128-multiple slabs when V is large."""
    if V <= target:
        return V
    t = (target // 128) * 128
    while t >= 128:
        if V % t == 0:
            return t
        t -= 128
    return V  # not 128-aligned: one full-width slab (masked stores, still correct)


def masked_word_predictions(x, w_dense, b_dense, gamma, beta,
                            w_decoder, decoder_bias, *, eps=1e-12,
                            row_tile_target=1024, col_tile_target=512):
    """Fused dense -> BertLayerNorm -> decoder (+bias).

    x:            (..., H)
    w_dense:      (H, H)   (in, out) layout == PyTorch transform.dense.weight.T
    b_dense:      (H,)
    gamma, beta:  (H,)     LayerNorm parameters
    w_decoder:    (H, V)   (in, out) layout == PyTorch decoder.weight.T
    decoder_bias: (V,)
    returns       (..., V), same dtype as x
    """
    orig_lead = x.shape[:-1]
    H = x.shape[-1]
    V = w_decoder.shape[-1]

    x2 = x.reshape(-1, H)
    R = x2.shape[0]

    # Keep per-row-tile VMEM (x tile + f32 scratch + out tile, double buffered)
    # bounded so the whole working set fits comfortably on every chip.
    tv = _col_tiling(V, col_tile_target)
    itemsize = jnp.dtype(x.dtype).itemsize
    per_row_bytes = 2 * itemsize * H + 4 * H + 2 * itemsize * tv
    budget = 28 * 1024 * 1024  # rows' share of VMEM; weights take the rest
    row_target = max(128, min(row_tile_target, budget // max(per_row_bytes, 1)))
    row_target -= row_target % 8
    tm, Rp = _row_tiling(R, row_target)

    if Rp != R:
        # Rare fallback only (costs one extra pass over x / out).  Padded rows
        # produce finite values (LayerNorm of the dense-bias row; eps>0 keeps
        # rsqrt finite) and are sliced off below -- do not "optimize" eps to 0.
        x2 = jnp.concatenate([x2, jnp.zeros((Rp - R, H), x2.dtype)], axis=0)

    bd = b_dense.reshape(1, H)
    g2 = gamma.reshape(1, H)
    b2 = beta.reshape(1, H)
    bias2 = decoder_bias.reshape(1, V)

    grid = (Rp // tm, V // tv)

    cost = pl.CostEstimate(
        flops=2 * R * H * H + 2 * R * H * V + 7 * R * H,
        transcendentals=R,
        bytes_accessed=itemsize * (R * H + R * V + H * H + H * V + 4 * H + V),
    )

    out = pl.pallas_call(
        functools.partial(_mwp_kernel, eps=eps),
        out_shape=jax.ShapeDtypeStruct((Rp, V), x.dtype),
        grid_spec=pltpu.PrefetchScalarGridSpec(
            num_scalar_prefetch=0,
            grid=grid,
            in_specs=[
                pl.BlockSpec((tm, H), lambda i, j: (i, 0)),   # x rows
                pl.BlockSpec((H, H), lambda i, j: (0, 0)),    # dense W (VMEM-resident)
                pl.BlockSpec((1, H), lambda i, j: (0, 0)),    # dense bias
                pl.BlockSpec((1, H), lambda i, j: (0, 0)),    # gamma
                pl.BlockSpec((1, H), lambda i, j: (0, 0)),    # beta
                pl.BlockSpec((H, tv), lambda i, j: (0, j)),   # decoder W slab
                pl.BlockSpec((1, tv), lambda i, j: (0, j)),   # decoder bias slab
            ],
            out_specs=pl.BlockSpec((tm, tv), lambda i, j: (i, j)),
            scratch_shapes=[pltpu.VMEM((tm, H), jnp.float32)],
        ),
        compiler_params=pltpu.CompilerParams(
            dimension_semantics=("parallel", "arbitrary"),
            vmem_limit_bytes=64 * 1024 * 1024,
        ),
        cost_estimate=cost,
    )(x2, w_dense, bd, g2, b2, w_decoder, bias2)

    if Rp != R:
        out = out[:R]
    return out.reshape(*orig_lead, V)


if __name__ == "__main__":
    key = jax.random.PRNGKey(0)
    # Small, lane-friendly demo shapes (hidden and vocab 128-aligned).
    batch, seq, hidden, vocab = 2, 8, 128, 256
    kx, kwd, kbd, kwv = jax.random.split(key, 4)

    x = jax.random.normal(kx, (batch, seq, hidden), dtype=jnp.float32)
    scale = 1.0 / math.sqrt(hidden)
    # Linear weights in (in, out) layout (= PyTorch weight.T); module __init__
    # gives gamma=ones, beta=zeros, decoder bias=zeros.
    w_dense = scale * jax.random.normal(kwd, (hidden, hidden), dtype=jnp.float32)
    b_dense = scale * jax.random.normal(kbd, (hidden,), dtype=jnp.float32)
    gamma = jnp.ones((hidden,), dtype=jnp.float32)
    beta = jnp.zeros((hidden,), dtype=jnp.float32)
    w_decoder = scale * jax.random.normal(kwv, (hidden, vocab), dtype=jnp.float32)
    decoder_bias = jnp.zeros((vocab,), dtype=jnp.float32)

    y = masked_word_predictions(x, w_dense, b_dense, gamma, beta,
                                w_decoder, decoder_bias, eps=1e-12)
    y = jax.block_until_ready(y)

    # Pure-JAX reference (same math as the PyTorch forward; no gelu, since the
    # reference forward never applies transform_act_fn).
    h = jnp.einsum("bsh,hk->bsk", x, w_dense,
                   precision=jax.lax.Precision.HIGHEST) + b_dense
    u = jnp.mean(h, axis=-1, keepdims=True)
    s = jnp.mean((h - u) ** 2, axis=-1, keepdims=True)
    hn = gamma * (h - u) / jnp.sqrt(s + 1e-12) + beta
    y_ref = jnp.einsum("bsh,hv->bsv", hn, w_decoder,
                       precision=jax.lax.Precision.HIGHEST) + decoder_bias

    assert y.shape == (batch, seq, vocab) and y.dtype == x.dtype
    assert jnp.allclose(y, y_ref, atol=2e-2, rtol=2e-2), \
        float(jnp.max(jnp.abs(y - y_ref)))

    print("KERNEL_OK")
</pallas_src>

<mosaic_0001>
module attributes {stable_mosaic.version = 11 : i64} {
  func.func @_mwp_kernel(%arg0: i32, %arg1: i32, %arg2: memref<16x128xf32, #tpu.memory_space<vmem>>, %arg3: memref<128x128xf32, #tpu.memory_space<vmem>>, %arg4: memref<1x128xf32, #tpu.memory_space<vmem>>, %arg5: memref<1x128xf32, #tpu.memory_space<vmem>>, %arg6: memref<1x128xf32, #tpu.memory_space<vmem>>, %arg7: memref<128x256xf32, #tpu.memory_space<vmem>>, %arg8: memref<1x256xf32, #tpu.memory_space<vmem>>, %arg9: memref<16x256xf32, #tpu.memory_space<vmem>>, %arg10: memref<16x128xf32, #tpu.memory_space<vmem>>) attributes {dimension_semantics = [#tpu.dimension_semantics<parallel>, #tpu.dimension_semantics<arbitrary>], iteration_bounds = array<i64: 1, 1>, scalar_prefetch = 0 : i64, scratch_operands = 1 : i64, tpu.core_type = #tpu.core_type<tc>, window_params = [{transform_indices = @transform_0, window_bounds = array<i64: 16, 128>}, {pipeline_mode = #tpu.pipeline_mode<synchronous>, transform_indices = @transform_1, window_bounds = array<i64: 128, 128>}, {pipeline_mode = #tpu.pipeline_mode<synchronous>, transform_indices = @transform_2, window_bounds = array<i64: 1, 128>}, {pipeline_mode = #tpu.pipeline_mode<synchronous>, transform_indices = @transform_3, window_bounds = array<i64: 1, 128>}, {pipeline_mode = #tpu.pipeline_mode<synchronous>, transform_indices = @transform_4, window_bounds = array<i64: 1, 128>}, {transform_indices = @transform_5, window_bounds = array<i64: 128, 256>}, {transform_indices = @transform_6, window_bounds = array<i64: 1, 256>}, {transform_indices = @transform_7, window_bounds = array<i64: 16, 256>}]} {
    %c0_i32 = arith.constant 0 : i32
    %0 = arith.cmpi eq, %arg1, %c0_i32 : i32
    %1 = arith.extui %0 : i1 to i32
    %c0_i32_0 = arith.constant 0 : i32
    %2 = arith.cmpi ne, %1, %c0_i32_0 : i32
    scf.if %2 {
      %c0_8 = arith.constant 0 : index
      %c0_9 = arith.constant 0 : index
      %10 = vector.load %arg2[%c0_8, %c0_9] : memref<16x128xf32, #tpu.memory_space<vmem>>, vector<16x128xf32>
      %c0_10 = arith.constant 0 : index
      %c0_11 = arith.constant 0 : index
      %11 = vector.load %arg3[%c0_10, %c0_11] : memref<128x128xf32, #tpu.memory_space<vmem>>, vector<128x128xf32>
      %cst_12 = arith.constant dense<0.000000e+00> : vector<16x128xf32>
      %12 = tpu.matmul %10, %11, %cst_12 {dimension_numbers = #tpu.dot_dimension_numbers<[1], [0], [0], [1], [0, 0, 1, 1], [], []>} : vector<16x128xf32>, vector<128x128xf32>, vector<16x128xf32> -> vector<16x128xf32>
      %c0_13 = arith.constant 0 : index
      %c0_14 = arith.constant 0 : index
      %13 = vector.load %arg4[%c0_13, %c0_14] : memref<1x128xf32, #tpu.memory_space<vmem>>, vector<1x128xf32>
      %14 = vector.broadcast %13 : vector<1x128xf32> to vector<16x128xf32>
      %15 = arith.addf %12, %14 : vector<16x128xf32>
      %cst_15 = arith.constant dense<0.000000e+00> : vector<16xf32>
      %16 = vector.multi_reduction <add>, %15, %cst_15 [1] : vector<16x128xf32> to vector<16xf32>
      %17 = vector.shape_cast %16 : vector<16xf32> to vector<16x1xf32>
      %cst_16 = arith.constant 1.280000e+02 : f32
      %18 = vector.broadcast %cst_16 : f32 to vector<16x1xf32>
      %19 = arith.divf %17, %18 : vector<16x1xf32>
      %20 = vector.broadcast %19 : vector<16x1xf32> to vector<16x128xf32>
      %21 = arith.subf %15, %20 : vector<16x128xf32>
      %22 = arith.mulf %21, %21 : vector<16x128xf32>
      %cst_17 = arith.constant dense<0.000000e+00> : vector<16xf32>
      %23 = vector.multi_reduction <add>, %22, %cst_17 [1] : vector<16x128xf32> to vector<16xf32>
      %24 = vector.shape_cast %23 : vector<16xf32> to vector<16x1xf32>
      %cst_18 = arith.constant 1.280000e+02 : f32
      %25 = vector.broadcast %cst_18 : f32 to vector<16x1xf32>
      %26 = arith.divf %24, %25 : vector<16x1xf32>
      %cst_19 = arith.constant 9.99999996E-13 : f32
      %27 = vector.broadcast %cst_19 : f32 to vector<16x1xf32>
      %28 = arith.addf %26, %27 : vector<16x1xf32>
      %29 = math.rsqrt %28 : vector<16x1xf32>
      %30 = vector.broadcast %29 : vector<16x1xf32> to vector<16x128xf32>
      %31 = arith.mulf %21, %30 : vector<16x128xf32>
      %c0_20 = arith.constant 0 : index
      %c0_21 = arith.constant 0 : index
      %32 = vector.load %arg5[%c0_20, %c0_21] : memref<1x128xf32, #tpu.memory_space<vmem>>, vector<1x128xf32>
      %33 = vector.broadcast %32 : vector<1x128xf32> to vector<16x128xf32>
      %34 = arith.mulf %33, %31 : vector<16x128xf32>
      %c0_22 = arith.constant 0 : index
      %c0_23 = arith.constant 0 : index
      %35 = vector.load %arg6[%c0_22, %c0_23] : memref<1x128xf32, #tpu.memory_space<vmem>>, vector<1x128xf32>
      %36 = vector.broadcast %35 : vector<1x128xf32> to vector<16x128xf32>
      %37 = arith.addf %34, %36 : vector<16x128xf32>
      %c0_24 = arith.constant 0 : index
      %c0_25 = arith.constant 0 : index
      %38 = vector.load %arg10[%c0_24, %c0_25] : memref<16x128xf32, #tpu.memory_space<vmem>>, vector<16x128xf32>
      tpu.vector_store %arg10[%c0_24, %c0_25], %37 {strides = array<i32>} : memref<16x128xf32, #tpu.memory_space<vmem>>, vector<16x128xf32>,
    } else {
    }
    %c0 = arith.constant 0 : index
    %c0_1 = arith.constant 0 : index
    %3 = vector.load %arg10[%c0, %c0_1] : memref<16x128xf32, #tpu.memory_space<vmem>>, vector<16x128xf32>
    %c0_2 = arith.constant 0 : index
    %c0_3 = arith.constant 0 : index
    %4 = vector.load %arg7[%c0_2, %c0_3] : memref<128x256xf32, #tpu.memory_space<vmem>>, vector<128x256xf32>
    %cst = arith.constant dense<0.000000e+00> : vector<16x256xf32>
    %5 = tpu.matmul %3, %4, %cst {dimension_numbers = #tpu.dot_dimension_numbers<[1], [0], [0], [1], [0, 0, 1, 1], [], []>} : vector<16x128xf32>, vector<128x256xf32>, vector<16x256xf32> -> vector<16x256xf32>
    %c0_4 = arith.constant 0 : index
    %c0_5 = arith.constant 0 : index
    %6 = vector.load %arg8[%c0_4, %c0_5] : memref<1x256xf32, #tpu.memory_space<vmem>>, vector<1x256xf32>
    %7 = vector.broadcast %6 : vector<1x256xf32> to vector<16x256xf32>
    %8 = arith.addf %5, %7 : vector<16x256xf32>
    %c0_6 = arith.constant 0 : index
    %c0_7 = arith.constant 0 : index
    %9 = vector.load %arg9[%c0_6, %c0_7] : memref<16x256xf32, #tpu.memory_space<vmem>>, vector<16x256xf32>
    tpu.vector_store %arg9[%c0_6, %c0_7], %8 {strides = array<i32>} : memref<16x256xf32, #tpu.memory_space<vmem>>, vector<16x256xf32>,
    return
  }
  func.func @transform_0(%arg0: i32, %arg1: i32) -> (i32, i32) {
    %c0_i32 = arith.constant 0 : i32
    %c0_i32_0 = arith.constant 0 : i32
    return %arg0, %c0_i32 : i32, i32
  }
  func.func @transform_1(%arg0: i32, %arg1: i32) -> (i32, i32) {
    %c0_i32 = arith.constant 0 : i32
    %c0_i32_0 = arith.constant 0 : i32
    %c0_i32_1 = arith.constant 0 : i32
    return %c0_i32, %c0_i32_0 : i32, i32
  }
  func.func @transform_2(%arg0: i32, %arg1: i32) -> (i32, i32) {
    %c0_i32 = arith.constant 0 : i32
    %c0_i32_0 = arith.constant 0 : i32
    %c0_i32_1 = arith.constant 0 : i32
    return %c0_i32, %c0_i32_0 : i32, i32
  }
  func.func @transform_3(%arg0: i32, %arg1: i32) -> (i32, i32) {
    %c0_i32 = arith.constant 0 : i32
    %c0_i32_0 = arith.constant 0 : i32
    %c0_i32_1 = arith.constant 0 : i32
    return %c0_i32, %c0_i32_0 : i32, i32
  }
  func.func @transform_4(%arg0: i32, %arg1: i32) -> (i32, i32) {
    %c0_i32 = arith.constant 0 : i32
    %c0_i32_0 = arith.constant 0 : i32
    %c0_i32_1 = arith.constant 0 : i32
    return %c0_i32, %c0_i32_0 : i32, i32
  }
  func.func @transform_5(%arg0: i32, %arg1: i32) -> (i32, i32) {
    %c0_i32 = arith.constant 0 : i32
    %c0_i32_0 = arith.constant 0 : i32
    return %c0_i32, %arg1 : i32, i32
  }
  func.func @transform_6(%arg0: i32, %arg1: i32) -> (i32, i32) {
    %c0_i32 = arith.constant 0 : i32
    %c0_i32_0 = arith.constant 0 : i32
    return %c0_i32, %arg1 : i32, i32
  }
  func.func @transform_7(%arg0: i32, %arg1: i32) -> (i32, i32) {
    %c0_i32 = arith.constant 0 : i32
    return %arg0, %arg1 : i32, i32
  }
}

</mosaic_0001>

<llo_original>
// kernel: tpu_custom_call.1
$region0: #{tpu_custom_call.1}
  #allocation0 [shape = 'u32[]', space=smem, size = 0x4, offset = 0x4, fixed_abs, tag = 'smem constant byte address 0x4 - core index']
  #allocation1 [shape = 'u32[144,128]{1,0:T(1,128)}', space=vmem, size = 0x12000, scoped, tag = 'internal scratch']
  #allocation2 [shape = 'f32[16,128]{1,0:T(8,128)}', space=vmem, size = 0x2000, scoped, tag = 'scratch operand']
  %s0 = inlined_call_operand.hbm [shape: f32[16,128], index: 0, kind: input, shape index: {}]
  %s1 = inlined_call_operand.hbm [shape: f32[128,128], index: 1, kind: input, shape index: {}]
  %s2 = inlined_call_operand.hbm [shape: f32[1,128], index: 2, kind: input, shape index: {}]
  %s3 = inlined_call_operand.hbm [shape: f32[1,128], index: 3, kind: input, shape index: {}]
  %s4 = inlined_call_operand.hbm [shape: f32[1,128], index: 4, kind: input, shape index: {}]
  %s5 = inlined_call_operand.hbm [shape: f32[128,256], index: 5, kind: input, shape index: {}]
  %s6 = inlined_call_operand.hbm [shape: f32[1,256], index: 6, kind: input, shape index: {}]
  %s7 = inlined_call_operand.hbm [shape: f32[16,256], index: 7, kind: output, shape index: {}]
  %s8 = sld [smem:[#allocation0]]
  $region70: #{tpu_custom_call.1} parent=0
    _
  %s10 = ssub.s32 1, %s8
  %s11 = scalar_select 0, %s10, %s8
  $region1: #{tpu_custom_call.1} parent=0
    #allocation3 [shape = 'u8[8192]{0}', space=vmem, size = 0x2000, scoped, tag = 'input window, operand 0, single buffered']
    #allocation4 [shape = 's32[1]{0}', space=sflag, size = 0x4, scoped, tag = 'scoped memory for tpu_custom_call.1']
    #allocation5 [shape = 's32[1]{0}', space=sflag, size = 0x4, scoped, tag = 'scoped memory for tpu_custom_call.1']
    #allocation6 [shape = 'u8[65536]{0}', space=vmem, size = 0x10000, scoped, tag = 'input window, operand 1, single buffered']
    #allocation7 [shape = 's32[1]{0}', space=sflag, size = 0x4, scoped, tag = 'scoped memory for tpu_custom_call.1']
    #allocation8 [shape = 'u8[512]{0}', space=vmem, size = 0x400, scoped, tag = 'input window, operand 2, single buffered']
    #allocation9 [shape = 'u8[512]{0}', space=vmem, size = 0x400, scoped, tag = 'input window, operand 3, single buffered']
    #allocation10 [shape = 's32[1]{0}', space=sflag, size = 0x4, scoped, tag = 'scoped memory for tpu_custom_call.1']
    #allocation11 [shape = 'u8[512]{0}', space=vmem, size = 0x400, scoped, tag = 'input window, operand 4, single buffered']
    #allocation12 [shape = 'u8[131072]{0}', space=vmem, size = 0x20000, scoped, tag = 'input window, operand 5, single buffered']
    #allocation13 [shape = 's32[1]{0}', space=sflag, size = 0x4, scoped, tag = 'scoped memory for tpu_custom_call.1']
    #allocation14 [shape = 'u8[1024]{0}', space=vmem, size = 0x400, scoped, tag = 'input window, operand 6, single buffered']
    #allocation15 [shape = 'u8[16384]{0}', space=vmem, size = 0x4000, scoped, tag = 'output window, operand 0, single buffered']
    %12 = vsyncpa [#allocation4], 0
    %13 = vsyncpa [#allocation7], 0
    %14 = vsyncpa [#allocation10], 0
    %15 = vsyncpa [#allocation13], 0
    %16 = vsyncpa [#allocation5], 0
    // Predicated region
    $region2: #{tpu_custom_call.1} parent=1 // pred_check
      _
    $region3: #{tpu_custom_call.1} parent=1 // pred_check_branch
      %18 = sbr.rel (0) target = $region5
    $region4: #{tpu_custom_call.1} parent=1 // pred_region
      %s20 = ssub.s32 256, 256
      %21 = vsyncadd [#allocation4], %s20
      %s22 = sshll.u32 [#allocation3], 4
      %s23 = int_to_ptr.vmem [resolvable:$true] %s22
      %28 = dma.hbm_to_vmem [thread:$0]  %s0, 256, %s23, [#allocation4], 128, 128, 8
    $region5: #{tpu_custom_call.1} parent=1 // pred_fallthru
      _
    // Predicated region
    $region6: #{tpu_custom_call.1} parent=1 // pred_check
      _
    $region7: #{tpu_custom_call.1} parent=1 // pred_check_branch
      %30 = sbr.rel (0) target = $region9
    $region8: #{tpu_custom_call.1} parent=1 // pred_region
      %s32 = ssub.s32 2048, 2048
      %33 = vsyncadd [#allocation7], %s32
      %s34 = sshll.u32 [#allocation6], 4
      %s35 = int_to_ptr.vmem [resolvable:$true] %s34
      %40 = dma.hbm_to_vmem [thread:$0]  %s1, 2048, %s35, [#allocation7], 128, 128, 8
    $region9: #{tpu_custom_call.1} parent=1 // pred_fallthru
      _
    // Predicated region
    $region10: #{tpu_custom_call.1} parent=1 // pred_check
      _
    $region11: #{tpu_custom_call.1} parent=1 // pred_check_branch
      %42 = sbr.rel (0) target = $region13
    $region12: #{tpu_custom_call.1} parent=1 // pred_region
      %s44 = ssub.s32 16, 16
      %45 = vsyncadd [#allocation7], %s44
      %s47 = sshll.u32 [#allocation8], 4
      %s48 = int_to_ptr.vmem [resolvable:$true] %s47
      %50 = dma.hbm_to_vmem [thread:$0]  %s2, 16, %s48, [#allocation7]
    $region13: #{tpu_custom_call.1} parent=1 // pred_fallthru
      _
    // Predicated region
    $region14: #{tpu_custom_call.1} parent=1 // pred_check
      _
    $region15: #{tpu_custom_call.1} parent=1 // pred_check_branch
      %52 = sbr.rel (0) target = $region17
    $region16: #{tpu_custom_call.1} parent=1 // pred_region
      %s54 = ssub.s32 16, 16
      %55 = vsyncadd [#allocation10], %s54
      %s57 = sshll.u32 [#allocation9], 4
      %s58 = int_to_ptr.vmem [resolvable:$true] %s57
      %60 = dma.hbm_to_vmem [thread:$0]  %s3, 16, %s58, [#allocation10]
    $region17: #{tpu_custom_call.1} parent=1 // pred_fallthru
      _
    // Predicated region
    $region18: #{tpu_custom_call.1} parent=1 // pred_check
      _
    $region19: #{tpu_custom_call.1} parent=1 // pred_check_branch
      %62 = sbr.rel (0) target = $region21
    $region20: #{tpu_custom_call.1} parent=1 // pred_region
      %s64 = ssub.s32 16, 16
      %65 = vsyncadd [#allocation10], %s64
      %s67 = sshll.u32 [#allocation11], 4
      %s68 = int_to_ptr.vmem [resolvable:$true] %s67
      %70 = dma.hbm_to_vmem [thread:$0]  %s4, 16, %s68, [#allocation10]
    $region21: #{tpu_custom_call.1} parent=1 // pred_fallthru
      _
    // Predicated region
    $region22: #{tpu_custom_call.1} parent=1 // pred_check
      _
    $region23: #{tpu_custom_call.1} parent=1 // pred_check_branch
      %72 = sbr.rel (0) target = $region25
    $region24: #{tpu_custom_call.1} parent=1 // pred_region
      %s74 = ssub.s32 4096, 4096
      %75 = vsyncadd [#allocation13], %s74
      %s76 = sshll.u32 [#allocation12], 4
      %s77 = int_to_ptr.vmem [resolvable:$true] %s76
      %82 = dma.hbm_to_vmem [thread:$0]  %s5, 4096, %s77, [#allocation13], 256, 256, 16
    $region25: #{tpu_custom_call.1} parent=1 // pred_fallthru
      _
    // Predicated region
    $region26: #{tpu_custom_call.1} parent=1 // pred_check
      _
    $region27: #{tpu_custom_call.1} parent=1 // pred_check_branch
      %84 = sbr.rel (0) target = $region29
    $region28: #{tpu_custom_call.1} parent=1 // pred_region
      %s86 = ssub.s32 32, 32
      %87 = vsyncadd [#allocation13], %s86
      %s89 = sshll.u32 [#allocation14], 4
      %s90 = int_to_ptr.vmem [resolvable:$true] %s89
      %92 = dma.hbm_to_vmem [thread:$0]  %s6, 32, %s90, [#allocation13]
    $region29: #{tpu_custom_call.1} parent=1 // pred_fallthru
      _
    // Predicated region
    $region30: #{tpu_custom_call.1} parent=1 // pred_check
      _
    $region31: #{tpu_custom_call.1} parent=1 // pred_check_branch
      %94 = sbr.rel (0) target = $region33
    $region32: #{tpu_custom_call.1} parent=1 // pred_region
      %95 = dma.done [#allocation4], 256
    $region33: #{tpu_custom_call.1} parent=1 // pred_fallthru
      _
    // Predicated region
    $region34: #{tpu_custom_call.1} parent=1 // pred_check
      _
    $region35: #{tpu_custom_call.1} parent=1 // pred_check_branch
      %97 = sbr.rel (0) target = $region37
    $region36: #{tpu_custom_call.1} parent=1 // pred_region
      %98 = dma.done [#allocation7], 2048
    $region37: #{tpu_custom_call.1} parent=1 // pred_fallthru
      _
    // Predicated region
    $region38: #{tpu_custom_call.1} parent=1 // pred_check
      _
    $region39: #{tpu_custom_call.1} parent=1 // pred_check_branch
      %100 = sbr.rel (0) target = $region41
    $region40: #{tpu_custom_call.1} parent=1 // pred_region
      %101 = dma.done [#allocation7], 16
    $region41: #{tpu_custom_call.1} parent=1 // pred_fallthru
      _
    // Predicated region
    $region42: #{tpu_custom_call.1} parent=1 // pred_check
      _
    $region43: #{tpu_custom_call.1} parent=1 // pred_check_branch
      %103 = sbr.rel (0) target = $region45
    $region44: #{tpu_custom_call.1} parent=1 // pred_region
      %104 = dma.done [#allocation10], 16
    $region45: #{tpu_custom_call.1} parent=1 // pred_fallthru
      _
    // Predicated region
    $region46: #{tpu_custom_call.1} parent=1 // pred_check
      _
    $region47: #{tpu_custom_call.1} parent=1 // pred_check_branch
      %106 = sbr.rel (0) target = $region49
    $region48: #{tpu_custom_call.1} parent=1 // pred_region
      %107 = dma.done [#allocation10], 16
    $region49: #{tpu_custom_call.1} parent=1 // pred_fallthru
      _
    // Predicated region
    $region50: #{tpu_custom_call.1} parent=1 // pred_check
      _
    $region51: #{tpu_custom_call.1} parent=1 // pred_check_branch
      %109 = sbr.rel (0) target = $region53
    $region52: #{tpu_custom_call.1} parent=1 // pred_region
      %110 = dma.done [#allocation13], 4096
    $region53: #{tpu_custom_call.1} parent=1 // pred_fallthru
      _
    // Predicated region
    $region54: #{tpu_custom_call.1} parent=1 // pred_check
      _
    $region55: #{tpu_custom_call.1} parent=1 // pred_check_branch
      %112 = sbr.rel (0) target = $region57
    $region56: #{tpu_custom_call.1} parent=1 // pred_region
      %113 = dma.done [#allocation13], 32
    $region57: #{tpu_custom_call.1} parent=1 // pred_fallthru
      _
    %p114 = scmp.eq.s32.totalorder 0, 0
    // Predicated region
    $region58: #{tpu_custom_call.1} parent=1 // pred_check
      %p115 = pneg %p114
    $region59: #{tpu_custom_call.1} parent=1 // pred_check_branch
      %117 = sbr.rel (%p115) target = $region61
    $region60: #{tpu_custom_call.1} parent=1 // pred_region
      %v118 = vld [vmem:[#allocation3] sm:$0xff]
      %v119 = vld [vmem:[#allocation3 + $0x8] sm:$0xff]
      %v120 = vld [vmem:[#allocation6] sm:$0xff]
      %v121 = vld [vmem:[#allocation6 + $0x8] sm:$0xff]
      %v122 = vld [vmem:[#allocation6 + $0x10] sm:$0xff]
      %v123 = vld [vmem:[#allocation6 + $0x18] sm:$0xff]
      %v124 = vld [vmem:[#allocation6 + $0x20] sm:$0xff]
      %v125 = vld [vmem:[#allocation6 + $0x28] sm:$0xff]
      %v126 = vld [vmem:[#allocation6 + $0x30] sm:$0xff]
      %v127 = vld [vmem:[#allocation6 + $0x38] sm:$0xff]
      %v128 = vld [vmem:[#allocation6 + $0x40] sm:$0xff]
      %v129 = vld [vmem:[#allocation6 + $0x48] sm:$0xff]
      %v130 = vld [vmem:[#allocation6 + $0x50] sm:$0xff]
      %v131 = vld [vmem:[#allocation6 + $0x58] sm:$0xff]
      %v132 = vld [vmem:[#allocation6 + $0x60] sm:$0xff]
      %v133 = vld [vmem:[#allocation6 + $0x68] sm:$0xff]
      %v134 = vld [vmem:[#allocation6 + $0x70] sm:$0xff]
      %v135 = vld [vmem:[#allocation6 + $0x78] sm:$0xff]
      %v136 = vld [vmem:[#allocation8] sm:$0x1]
      %v138 = vlaneseq
      %v139 = vshrl.u32 %v138, 7
      %v140 = vsub.s32 0, %v139
      %v141 = vrot.slane %v136, %v140
      %143 = vmatprep.subr.mxu0 0.0
      %144 = vmatpush1.msra.mxu0 %v120
      %145 = vmatprep.subr.mxu0 0.0
      %146 = vmatpush1.msra.mxu0 %v121
      %147 = vmatprep.subr.mxu0 0.0
      %148 = vmatpush1.msra.mxu0 %v122
      %149 = vmatprep.subr.mxu0 0.0
      %150 = vmatpush1.msra.mxu0 %v123
      %151 = vmatprep.subr.mxu0 0.0
      %152 = vmatpush1.msra.mxu0 %v124
      %153 = vmatprep.subr.mxu0 0.0
      %154 = vmatpush1.msra.mxu0 %v125
      %155 = vmatprep.subr.mxu0 0.0
      %156 = vmatpush1.msra.mxu0 %v126
      %157 = vmatprep.subr.mxu0 0.0
      %158 = vmatpush1.msra.mxu0 %v127
      %159 = vmatprep.subr.mxu0 0.0
      %160 = vmatpush1.msra.mxu0 %v128
      %161 = vmatprep.subr.mxu0 0.0
      %162 = vmatpush1.msra.mxu0 %v129
      %163 = vmatprep.subr.mxu0 0.0
      %164 = vmatpush1.msra.mxu0 %v130
      %165 = vmatprep.subr.mxu0 0.0
      %166 = vmatpush1.msra.mxu0 %v131
      %167 = vmatprep.subr.mxu0 0.0
      %168 = vmatpush1.msra.mxu0 %v132
      %169 = vmatprep.subr.mxu0 0.0
      %170 = vmatpush1.msra.mxu0 %v133
      %171 = vmatprep.subr.mxu0 0.0
      %172 = vmatpush1.msra.mxu0 %v134
      %173 = vmatprep.subr.mxu0 0.0
      %174 = vmatpush1.msra.mxu0 %v135
      %175 = vmatprep.subr.mxu0 0.0
      %176 = vmatpush1.msra.mxu0 0.0
      %177 = vmatprep.subr.mxu0 0.0
      %178 = vmatpush1.msra.mxu0 0.0
      %179 = vmatprep.subr.mxu0 0.0
      %180 = vmatpush1.msra.mxu0 0.0
      %181 = vmatprep.subr.mxu0 0.0
      %182 = vmatpush1.msra.mxu0 0.0
      %183 = vmatprep.subr.mxu0 0.0
      %184 = vmatpush1.msra.mxu0 0.0
      %185 = vmatprep.subr.mxu0 0.0
      %186 = vmatpush1.msra.mxu0 0.0
      %187 = vmatprep.subr.mxu0 0.0
      %188 = vmatpush1.msra.mxu0 0.0
      %189 = vmatprep.subr.mxu0 0.0
      %190 = vmatpush1.msra.mxu0 0.0
      %191 = vmatprep.subr.mxu0 0.0
      %192 = vmatpush1.msra.mxu0 0.0
      %193 = vmatprep.subr.mxu0 0.0
      %194 = vmatpush1.msra.mxu0 0.0
      %195 = vmatprep.subr.mxu0 0.0
      %196 = vmatpush1.msra.mxu0 0.0
      %197 = vmatprep.subr.mxu0 0.0
      %198 = vmatpush1.msra.mxu0 0.0
      %199 = vmatprep.subr.mxu0 0.0
      %200 = vmatpush1.msra.mxu0 0.0
      %201 = vmatprep.subr.mxu0 0.0
      %202 = vmatpush1.msra.mxu0 0.0
      %203 = vmatprep.subr.mxu0 0.0
      %204 = vmatpush1.msra.mxu0 0.0
      %205 = vmatprep.subr.mxu0 0.0
      %206 = vmatpush1.msra.mxu0 0.0
      %207 = vmatprep.mubr.f32.mxu0 0.0
      %208 = vmatmul.mubr.f32.gmra.mrb[0].mxu0 %v118
      %v209 = vpop.f32.mrb[0].mxu0
      %v210 = vadd.f32 %v141, %v209
      %v211 = vpop.f32.mrb[0].mxu0
      %212 = vmatprep.mubr.f32.mxu0 0.0
      %213 = vmatmul.mubr.f32.gmra.mrb[0].mxu0 %v119
      %v214 = vpop.f32.mrb[0].mxu0
      %v215 = vadd.f32 %v141, %v214
      %v216 = vpop.f32.mrb[0].mxu0
      %217 = vdwg.mxu0
      %218 = vadd.xlane.f32.xlu0 %v210
      %v219 = vpop.xlane.xlu0 %218
      %220 = vadd.xlane.f32.xlu0 %v215
      %v221 = vpop.xlane.xlu0 %220
      %v222 = vrcp.pop 128.0
      %v223 = vmul.f32 %v219, %v222
      %v224 = vmul.f32 %v221, %v222
      %v225 = vsub.f32 %v210, %v223
      %v226 = vsub.f32 %v215, %v224
      %v227 = vmul.f32 %v225, %v225
      %v228 = vmul.f32 %v226, %v226
      %229 = vadd.xlane.f32.xlu0 %v227
      %v230 = vpop.xlane.xlu0 %229
      %231 = vadd.xlane.f32.xlu0 %v228
      %v232 = vpop.xlane.xlu0 %231
      %v233 = vmul.f32 %v230, %v222
      %v234 = vmul.f32 %v232, %v222
      %v235 = vadd.f32 %v233, 1e-12
      %v236 = vadd.f32 %v234, 1e-12
      %v237 = vrsqrt.pop %v235
      %v238 = vrsqrt.pop %v236
      %v239 = vmul.f32 %v225, %v237
      %v240 = vmul.f32 %v226, %v238
      %v241 = vld [vmem:[#allocation9] sm:$0x1]
      %v243 = vlaneseq
      %v244 = vshrl.u32 %v243, 7
      %v245 = vsub.s32 0, %v244
      %v246 = vrot.slane %v241, %v245
      %v248 = vmul.f32 %v246, %v239
      %v249 = vmul.f32 %v246, %v240
      %v250 = vld [vmem:[#allocation11] sm:$0x1]
      %v252 = vlaneseq
      %v253 = vshrl.u32 %v252, 7
      %v254 = vsub.s32 0, %v253
      %v255 = vrot.slane %v250, %v254
      %v257 = vadd.f32 %v248, %v255
      %v258 = vadd.f32 %v249, %v255
      %259 = vst [vmem:[#allocation2] sm:$0xff] %v257
      %260 = vst [vmem:[#allocation2 + $0x8] sm:$0xff] %v258
    $region61: #{tpu_custom_call.1} parent=1 // pred_fallthru
      _
    %v261 = vld [vmem:[#allocation2] sm:$0xff]
    %v262 = vld [vmem:[#allocation2 + $0x8] sm:$0xff]
    %v263 = vld [vmem:[#allocation12] sm:$0xff]
    %v264 = vld [vmem:[#allocation12 + $0x8] sm:$0xff]
    %v265 = vld [vmem:[#allocation12 + $0x10] sm:$0xff]
    %v266 = vld [vmem:[#allocation12 + $0x18] sm:$0xff]
    %v267 = vld [vmem:[#allocation12 + $0x20] sm:$0xff]
    %v268 = vld [vmem:[#allocation12 + $0x28] sm:$0xff]
    %v269 = vld [vmem:[#allocation12 + $0x30] sm:$0xff]
    %v270 = vld [vmem:[#allocation12 + $0x38] sm:$0xff]
    %v271 = vld [vmem:[#allocation12 + $0x40] sm:$0xff]
    %v272 = vld [vmem:[#allocation12 + $0x48] sm:$0xff]
    %v273 = vld [vmem:[#allocation12 + $0x50] sm:$0xff]
    %v274 = vld [vmem:[#allocation12 + $0x58] sm:$0xff]
    %v275 = vld [vmem:[#allocation12 + $0x60] sm:$0xff]
    %v276 = vld [vmem:[#allocation12 + $0x68] sm:$0xff]
    %v277 = vld [vmem:[#allocation12 + $0x70] sm:$0xff]
    %v278 = vld [vmem:[#allocation12 + $0x78] sm:$0xff]
    %v279 = vld [vmem:[#allocation12 + $0x80] sm:$0xff]
    %v280 = vld [vmem:[#allocation12 + $0x88] sm:$0xff]
    %v281 = vld [vmem:[#allocation12 + $0x90] sm:$0xff]
    %v282 = vld [vmem:[#allocation12 + $0x98] sm:$0xff]
    %v283 = vld [vmem:[#allocation12 + $0xa0] sm:$0xff]
    %v284 = vld [vmem:[#allocation12 + $0xa8] sm:$0xff]
    %v285 = vld [vmem:[#allocation12 + $0xb0] sm:$0xff]
    %v286 = vld [vmem:[#allocation12 + $0xb8] sm:$0xff]
    %v287 = vld [vmem:[#allocation12 + $0xc0] sm:$0xff]
    %v288 = vld [vmem:[#allocation12 + $0xc8] sm:$0xff]
    %v289 = vld [vmem:[#allocation12 + $0xd0] sm:$0xff]
    %v290 = vld [vmem:[#allocation12 + $0xd8] sm:$0xff]
    %v291 = vld [vmem:[#allocation12 + $0xe0] sm:$0xff]
    %v292 = vld [vmem:[#allocation12 + $0xe8] sm:$0xff]
    %v293 = vld [vmem:[#allocation12 + $0xf0] sm:$0xff]
    %v294 = vld [vmem:[#allocation12 + $0xf8] sm:$0xff]
    %v295 = vld [vmem:[#allocation14] sm:$0x3]
    %v297 = vlaneseq
    %v298 = vshrl.u32 %v297, 7
    %v299 = vsub.s32 0, %v298
    %v300 = vrot.slane %v295, %v299
    %v301 = vlaneseq
    %v302 = vshrl.u32 %v301, 7
    %v303 = vsub.s32 1, %v302
    %v304 = vrot.slane %v295, %v303
    %307 = vmatprep.subr.mxu0 %v264
    %308 = vmatpush1.msra.mxu0 %v263
    %309 = vmatprep.subr.mxu0 %v266
    %310 = vmatpush1.msra.mxu0 %v265
    %311 = vmatprep.subr.mxu0 %v268
    %312 = vmatpush1.msra.mxu0 %v267
    %313 = vmatprep.subr.mxu0 %v270
    %314 = vmatpush1.msra.mxu0 %v269
    %315 = vmatprep.subr.mxu0 %v272
    %316 = vmatpush1.msra.mxu0 %v271
    %317 = vmatprep.subr.mxu0 %v274
    %318 = vmatpush1.msra.mxu0 %v273
    %319 = vmatprep.subr.mxu0 %v276
    %320 = vmatpush1.msra.mxu0 %v275
    %321 = vmatprep.subr.mxu0 %v278
    %322 = vmatpush1.msra.mxu0 %v277
    %323 = vmatprep.subr.mxu0 %v280
    %324 = vmatpush1.msra.mxu0 %v279
    %325 = vmatprep.subr.mxu0 %v282
    %326 = vmatpush1.msra.mxu0 %v281
    %327 = vmatprep.subr.mxu0 %v284
    %328 = vmatpush1.msra.mxu0 %v283
    %329 = vmatprep.subr.mxu0 %v286
    %330 = vmatpush1.msra.mxu0 %v285
    %331 = vmatprep.subr.mxu0 %v288
    %332 = vmatpush1.msra.mxu0 %v287
    %333 = vmatprep.subr.mxu0 %v290
    %334 = vmatpush1.msra.mxu0 %v289
    %335 = vmatprep.subr.mxu0 %v292
    %336 = vmatpush1.msra.mxu0 %v291
    %337 = vmatprep.subr.mxu0 %v294
    %338 = vmatpush1.msra.mxu0 %v293
    %339 = vmatprep.subr.mxu0 0.0
    %340 = vmatpush1.msra.mxu0 0.0
    %341 = vmatprep.subr.mxu0 0.0
    %342 = vmatpush1.msra.mxu0 0.0
    %343 = vmatprep.subr.mxu0 0.0
    %344 = vmatpush1.msra.mxu0 0.0
    %345 = vmatprep.subr.mxu0 0.0
    %346 = vmatpush1.msra.mxu0 0.0
    %347 = vmatprep.subr.mxu0 0.0
    %348 = vmatpush1.msra.mxu0 0.0
    %349 = vmatprep.subr.mxu0 0.0
    %350 = vmatpush1.msra.mxu0 0.0
    %351 = vmatprep.subr.mxu0 0.0
    %352 = vmatpush1.msra.mxu0 0.0
    %353 = vmatprep.subr.mxu0 0.0
    %354 = vmatpush1.msra.mxu0 0.0
    %355 = vmatprep.subr.mxu0 0.0
    %356 = vmatpush1.msra.mxu0 0.0
    %357 = vmatprep.subr.mxu0 0.0
    %358 = vmatpush1.msra.mxu0 0.0
    %359 = vmatprep.subr.mxu0 0.0
    %360 = vmatpush1.msra.mxu0 0.0
    %361 = vmatprep.subr.mxu0 0.0
    %362 = vmatpush1.msra.mxu0 0.0
    %363 = vmatprep.subr.mxu0 0.0
    %364 = vmatpush1.msra.mxu0 0.0
    %365 = vmatprep.subr.mxu0 0.0
    %366 = vmatpush1.msra.mxu0 0.0
    %367 = vmatprep.subr.mxu0 0.0
    %368 = vmatpush1.msra.mxu0 0.0
    %369 = vmatprep.subr.mxu0 0.0
    %370 = vmatpush1.msra.mxu0 0.0
    %371 = vmatprep.mubr.f32.mxu0 0.0
    %372 = vmatmul.mubr.f32.gmra.mrb[0].mxu0 %v261
    %v373 = vpop.f32.mrb[0].mxu0
    %v374 = vadd.f32 %v300, %v373
    %v375 = vpop.f32.mrb[0].mxu0
    %v376 = vadd.f32 %v304, %v375
    %377 = vmatprep.mubr.f32.mxu0 0.0
    %378 = vmatmul.mubr.f32.gmra.mrb[0].mxu0 %v262
    %v379 = vpop.f32.mrb[0].mxu0
    %v380 = vadd.f32 %v300, %v379
    %v381 = vpop.f32.mrb[0].mxu0
    %v382 = vadd.f32 %v304, %v381
    %383 = vdwg.mxu0
    %384 = vst [vmem:[#allocation15] sm:$0xff] %v374
    %385 = vst [vmem:[#allocation15 + $0x8] sm:$0xff] %v376
    %386 = vst [vmem:[#allocation15 + $0x10] sm:$0xff] %v380
    %387 = vst [vmem:[#allocation15 + $0x18] sm:$0xff] %v382
    // Predicated region
    $region62: #{tpu_custom_call.1} parent=1 // pred_check
      _
    $region63: #{tpu_custom_call.1} parent=1 // pred_check_branch
      %389 = sbr.rel (0) target = $region65
    $region64: #{tpu_custom_call.1} parent=1 // pred_region
      %s391 = ssub.s32 512, 512
      %392 = vsyncadd [#allocation5], %s391
      %s393 = sshll.u32 [#allocation15], 4
      %s394 = int_to_ptr.vmem [resolvable:$true] %s393
      %399 = dma.vmem_to_hbm [thread:$0]  %s394, 512, %s7, [#allocation5], 256, 256, 16
    $region65: #{tpu_custom_call.1} parent=1 // pred_fallthru
      _
    // Predicated region
    $region66: #{tpu_custom_call.1} parent=1 // pred_check
      _
    $region67: #{tpu_custom_call.1} parent=1 // pred_check_branch
      %401 = sbr.rel (0) target = $region69
    $region68: #{tpu_custom_call.1} parent=1 // pred_region
      %402 = dma.done [#allocation5], 512
    $region69: #{tpu_custom_call.1} parent=1 // pred_fallthru
      _
    %403 = vsyncpa [#allocation4], 1
    %404 = vsyncpa [#allocation7], 1
    %405 = vsyncpa [#allocation10], 1
    %406 = vsyncpa [#allocation13], 1
    %407 = vsyncpa [#allocation5], 1

</llo_original>
